<compile_context>
chip_gen: v7x
topology: tpu7x:2x2x1
jax: 0.10.0
libtpu: 0.0.40
codegen_flags: <defaults>
</compile_context>

<pallas_src>
import jax
import jax.numpy as jnp
from jax.experimental import pallas as pl
from jax.experimental.pallas import tpu as pltpu


def _round_up(n, m):
    return ((n + m - 1) // m) * m


def nkat_mlp_kernel(x_ref, w1_ref, b1_ref, w2_ref, b2_ref, w3_ref, b3_ref, o_ref):
    """Fused 3-layer MLP on one (in_dim, TB) batch tile, feature-major layout."""
    xt = x_ref[...].astype(jnp.float32)                  # (4, TB)  bf16 -> f32 at load
    h1 = jnp.dot(w1_ref[...], xt, preferred_element_type=jnp.float32) + b1_ref[...]
    h1 = jnp.maximum(h1, 0.0)                            # (64, TB) ReLU (Dropout = id, eval)
    h2 = jnp.dot(w2_ref[...], h1, preferred_element_type=jnp.float32) + b2_ref[...]
    h2 = jnp.maximum(h2, 0.0)                            # (32, TB)
    # Final Linear(32 -> 1): M == 1, so use a VPU lane-broadcast multiply plus a
    # sublane (XLU) reduction rather than a padded single-row MXU pass.
    out = jnp.sum(w3_ref[...] * h2, axis=0, keepdims=True) + b3_ref[...]   # (1, TB)
    o_ref[...] = out.astype(o_ref.dtype)                 # bf16 at store


def nkat_forward(x, params, *, tile_b=512, io_dtype=jnp.bfloat16):
    """Forward pass.  x: (batch, in_dim) float; returns (batch, 1) in io_dtype."""
    (w1, b1), (w2, b2), (w3, b3) = params        # PyTorch layout: W (out, in), b (out,)
    batch, in_dim = x.shape
    h1_dim, h2_dim, out_dim = w1.shape[0], w2.shape[0], w3.shape[0]
    assert tile_b % 128 == 0

    # Lane-dense layout: pad batch up to a multiple of the tile and transpose so
    # batch is the last (lane) dimension.  Padded columns are discarded at the end.
    tb = min(tile_b, _round_up(batch, 128))
    b_pad = _round_up(batch, tb)
    xt = jnp.pad(x.T.astype(io_dtype), ((0, 0), (0, b_pad - batch)))       # (in_dim, b_pad)

    w1f = w1.astype(jnp.float32)                                           # (64, 4)
    w2f = w2.astype(jnp.float32)                                           # (32, 64)
    w3c = w3.astype(jnp.float32).T                                         # (32, 1) column
    b1c = b1.astype(jnp.float32).reshape(h1_dim, 1)
    b2c = b2.astype(jnp.float32).reshape(h2_dim, 1)
    b3c = b3.astype(jnp.float32).reshape(out_dim, 1)

    # Constant index_map => block stays VMEM-resident, no re-DMA per grid step.
    const = lambda shape: pl.BlockSpec(shape, lambda i: (0, 0))

    out_t = pl.pallas_call(
        nkat_mlp_kernel,
        out_shape=jax.ShapeDtypeStruct((out_dim, b_pad), io_dtype),
        grid=(b_pad // tb,),
        in_specs=[
            pl.BlockSpec((in_dim, tb), lambda i: (0, i)),   # x tile follows the grid
            const(w1f.shape), const((h1_dim, 1)),
            const(w2f.shape), const((h2_dim, 1)),
            const((h2_dim, out_dim)), const((out_dim, 1)),
        ],
        out_specs=pl.BlockSpec((out_dim, tb), lambda i: (0, i)),
        compiler_params=pltpu.CompilerParams(
            dimension_semantics=("parallel",)),             # v7x: 2 TCs split batch tiles
    )(xt, w1f, b1c, w2f, b2c, w3c, b3c)

    return out_t[:, :batch].T                               # (batch, 1) in io_dtype


def init_params(key, input_dim=4, hidden_dims=(64, 32)):
    """Deterministic PyTorch-style (Kaiming-uniform-ish) init; W is (out, in)."""
    dims = [input_dim, *hidden_dims, 1]
    params = []
    for i in range(len(dims) - 1):
        fan_in, fan_out = dims[i], dims[i + 1]
        key, kw, kb = jax.random.split(key, 3)
        bound = 1.0 / (fan_in ** 0.5)
        w = jax.random.uniform(kw, (fan_out, fan_in), jnp.float32, -bound, bound)
        b = jax.random.uniform(kb, (fan_out,), jnp.float32, -bound, bound)
        params.append((w, b))
    return params


def reference_forward(x, params):
    """Plain-JAX reference (PyTorch weight layout) for correctness check."""
    (w1, b1), (w2, b2), (w3, b3) = params
    h1 = jnp.maximum(x @ w1.T + b1, 0.0)
    h2 = jnp.maximum(h1 @ w2.T + b2, 0.0)
    return h2 @ w3.T + b3


if __name__ == "__main__":
    key = jax.random.PRNGKey(0)
    key, kx = jax.random.split(key)

    batch, input_dim = 8, 4
    x = jax.random.normal(kx, (batch, input_dim), jnp.float32)
    params = init_params(key, input_dim=input_dim, hidden_dims=(64, 32))

    out = nkat_forward(x, params)                # (batch, 1) bfloat16
    out = jax.block_until_ready(out)

    # Reference sees the same bf16-quantized input the kernel loads; remaining
    # difference is only the final bf16 store (~0.4% relative).
    x_q = x.astype(jnp.bfloat16).astype(jnp.float32)
    ref = reference_forward(x_q, params)

    assert out.shape == (batch, 1), out.shape
    assert jnp.allclose(out.astype(jnp.float32), ref, atol=1e-2, rtol=1e-2), \
        "mismatch vs reference"

    print("KERNEL_OK")
</pallas_src>

<mosaic_0001>
module attributes {stable_mosaic.version = 11 : i64} {
  func.func @nkat_mlp_kernel(%arg0: i32, %arg1: memref<4x128xbf16, #tpu.memory_space<vmem>>, %arg2: memref<64x4xf32, #tpu.memory_space<vmem>>, %arg3: memref<64x1xf32, #tpu.memory_space<vmem>>, %arg4: memref<32x64xf32, #tpu.memory_space<vmem>>, %arg5: memref<32x1xf32, #tpu.memory_space<vmem>>, %arg6: memref<32x1xf32, #tpu.memory_space<vmem>>, %arg7: memref<1x1xf32, #tpu.memory_space<vmem>>, %arg8: memref<1x128xbf16, #tpu.memory_space<vmem>>) attributes {dimension_semantics = [#tpu.dimension_semantics<parallel>], iteration_bounds = array<i64: 1>, scalar_prefetch = 0 : i64, scratch_operands = 0 : i64, tpu.core_type = #tpu.core_type<tc>, window_params = [{transform_indices = @transform_0, window_bounds = array<i64: 4, 128>}, {pipeline_mode = #tpu.pipeline_mode<synchronous>, transform_indices = @transform_1, window_bounds = array<i64: 64, 4>}, {pipeline_mode = #tpu.pipeline_mode<synchronous>, transform_indices = @transform_2, window_bounds = array<i64: 64, 1>}, {pipeline_mode = #tpu.pipeline_mode<synchronous>, transform_indices = @transform_3, window_bounds = array<i64: 32, 64>}, {pipeline_mode = #tpu.pipeline_mode<synchronous>, transform_indices = @transform_4, window_bounds = array<i64: 32, 1>}, {pipeline_mode = #tpu.pipeline_mode<synchronous>, transform_indices = @transform_5, window_bounds = array<i64: 32, 1>}, {pipeline_mode = #tpu.pipeline_mode<synchronous>, transform_indices = @transform_6, window_bounds = array<i64: 1, 1>}, {transform_indices = @transform_7, window_bounds = array<i64: 1, 128>}]} {
    %c0 = arith.constant 0 : index
    %c0_0 = arith.constant 0 : index
    %0 = vector.load %arg1[%c0, %c0_0] : memref<4x128xbf16, #tpu.memory_space<vmem>>, vector<4x128xbf16>
    %1 = arith.extf %0 : vector<4x128xbf16> to vector<4x128xf32>
    %c0_1 = arith.constant 0 : index
    %c0_2 = arith.constant 0 : index
    %2 = vector.load %arg2[%c0_1, %c0_2] : memref<64x4xf32, #tpu.memory_space<vmem>>, vector<64x4xf32>
    %cst = arith.constant dense<0.000000e+00> : vector<64x128xf32>
    %3 = tpu.matmul %2, %1, %cst {dimension_numbers = #tpu.dot_dimension_numbers<[1], [0], [0], [1], [0, 0, 1, 1], [], []>} : vector<64x4xf32>, vector<4x128xf32>, vector<64x128xf32> -> vector<64x128xf32>
    %c0_3 = arith.constant 0 : index
    %c0_4 = arith.constant 0 : index
    %4 = vector.load %arg3[%c0_3, %c0_4] : memref<64x1xf32, #tpu.memory_space<vmem>>, vector<64x1xf32>
    %5 = vector.broadcast %4 : vector<64x1xf32> to vector<64x128xf32>
    %6 = arith.addf %3, %5 : vector<64x128xf32>
    %cst_5 = arith.constant 0.000000e+00 : f32
    %7 = vector.broadcast %cst_5 : f32 to vector<64x128xf32>
    %8 = arith.maximumf %6, %7 : vector<64x128xf32>
    %c0_6 = arith.constant 0 : index
    %c0_7 = arith.constant 0 : index
    %9 = vector.load %arg4[%c0_6, %c0_7] : memref<32x64xf32, #tpu.memory_space<vmem>>, vector<32x64xf32>
    %cst_8 = arith.constant dense<0.000000e+00> : vector<32x128xf32>
    %10 = tpu.matmul %9, %8, %cst_8 {dimension_numbers = #tpu.dot_dimension_numbers<[1], [0], [0], [1], [0, 0, 1, 1], [], []>} : vector<32x64xf32>, vector<64x128xf32>, vector<32x128xf32> -> vector<32x128xf32>
    %c0_9 = arith.constant 0 : index
    %c0_10 = arith.constant 0 : index
    %11 = vector.load %arg5[%c0_9, %c0_10] : memref<32x1xf32, #tpu.memory_space<vmem>>, vector<32x1xf32>
    %12 = vector.broadcast %11 : vector<32x1xf32> to vector<32x128xf32>
    %13 = arith.addf %10, %12 : vector<32x128xf32>
    %cst_11 = arith.constant 0.000000e+00 : f32
    %14 = vector.broadcast %cst_11 : f32 to vector<32x128xf32>
    %15 = arith.maximumf %13, %14 : vector<32x128xf32>
    %c0_12 = arith.constant 0 : index
    %c0_13 = arith.constant 0 : index
    %16 = vector.load %arg6[%c0_12, %c0_13] : memref<32x1xf32, #tpu.memory_space<vmem>>, vector<32x1xf32>
    %17 = vector.broadcast %16 : vector<32x1xf32> to vector<32x128xf32>
    %18 = arith.mulf %17, %15 : vector<32x128xf32>
    %cst_14 = arith.constant dense<0.000000e+00> : vector<128xf32>
    %19 = vector.multi_reduction <add>, %18, %cst_14 [0] : vector<32x128xf32> to vector<128xf32>
    %20 = vector.shape_cast %19 : vector<128xf32> to vector<1x128xf32>
    %c0_15 = arith.constant 0 : index
    %c0_16 = arith.constant 0 : index
    %21 = vector.load %arg7[%c0_15, %c0_16] : memref<1x1xf32, #tpu.memory_space<vmem>>, vector<1x1xf32>
    %22 = vector.broadcast %21 : vector<1x1xf32> to vector<1x128xf32>
    %23 = arith.addf %20, %22 : vector<1x128xf32>
    %24 = arith.truncf %23 : vector<1x128xf32> to vector<1x128xbf16>
    %c0_17 = arith.constant 0 : index
    %c0_18 = arith.constant 0 : index
    %25 = vector.load %arg8[%c0_17, %c0_18] : memref<1x128xbf16, #tpu.memory_space<vmem>>, vector<1x128xbf16>
    tpu.vector_store %arg8[%c0_17, %c0_18], %24 {strides = array<i32>} : memref<1x128xbf16, #tpu.memory_space<vmem>>, vector<1x128xbf16>,
    return
  }
  func.func @transform_0(%arg0: i32) -> (i32, i32) {
    %c0_i32 = arith.constant 0 : i32
    %c0_i32_0 = arith.constant 0 : i32
    return %c0_i32, %arg0 : i32, i32
  }
  func.func @transform_1(%arg0: i32) -> (i32, i32) {
    %c0_i32 = arith.constant 0 : i32
    %c0_i32_0 = arith.constant 0 : i32
    %c0_i32_1 = arith.constant 0 : i32
    return %c0_i32, %c0_i32_0 : i32, i32
  }
  func.func @transform_2(%arg0: i32) -> (i32, i32) {
    %c0_i32 = arith.constant 0 : i32
    %c0_i32_0 = arith.constant 0 : i32
    %c0_i32_1 = arith.constant 0 : i32
    return %c0_i32, %c0_i32_0 : i32, i32
  }
  func.func @transform_3(%arg0: i32) -> (i32, i32) {
    %c0_i32 = arith.constant 0 : i32
    %c0_i32_0 = arith.constant 0 : i32
    %c0_i32_1 = arith.constant 0 : i32
    return %c0_i32, %c0_i32_0 : i32, i32
  }
  func.func @transform_4(%arg0: i32) -> (i32, i32) {
    %c0_i32 = arith.constant 0 : i32
    %c0_i32_0 = arith.constant 0 : i32
    %c0_i32_1 = arith.constant 0 : i32
    return %c0_i32, %c0_i32_0 : i32, i32
  }
  func.func @transform_5(%arg0: i32) -> (i32, i32) {
    %c0_i32 = arith.constant 0 : i32
    %c0_i32_0 = arith.constant 0 : i32
    %c0_i32_1 = arith.constant 0 : i32
    return %c0_i32, %c0_i32_0 : i32, i32
  }
  func.func @transform_6(%arg0: i32) -> (i32, i32) {
    %c0_i32 = arith.constant 0 : i32
    %c0_i32_0 = arith.constant 0 : i32
    %c0_i32_1 = arith.constant 0 : i32
    return %c0_i32, %c0_i32_0 : i32, i32
  }
  func.func @transform_7(%arg0: i32) -> (i32, i32) {
    %c0_i32 = arith.constant 0 : i32
    %c0_i32_0 = arith.constant 0 : i32
    return %c0_i32, %arg0 : i32, i32
  }
}

</mosaic_0001>

<llo_original>
// kernel: tpu_custom_call.1
$region0: #{tpu_custom_call.1}
  #allocation0 [shape = 'u32[]', space=smem, size = 0x4, offset = 0x4, fixed_abs, tag = 'smem constant byte address 0x4 - core index']
  #allocation1 [shape = 'u32[144,128]{1,0:T(1,128)}', space=vmem, size = 0x12000, scoped, tag = 'internal scratch']
  #allocation2 [shape = 'f32[1,1]{1,0:T(1,128)S(1)}', space=vmem, size = 0x200, scoped, tag = 'scoped memory for tpu_custom_call.1']
  %s0 = inlined_call_operand.vmem [shape: bf16[4,128], index: 0, kind: input, shape index: {}]
  %s1 = inlined_call_operand.vmem [shape: f32[64,4], index: 1, kind: input, shape index: {}]
  %s2 = inlined_call_operand.vmem [shape: f32[64,1], index: 2, kind: input, shape index: {}]
  %s3 = inlined_call_operand.vmem [shape: f32[32,64], index: 3, kind: input, shape index: {}]
  %s4 = inlined_call_operand.vmem [shape: f32[32,1], index: 4, kind: input, shape index: {}]
  %s5 = inlined_call_operand.vmem [shape: f32[32,1], index: 5, kind: input, shape index: {}]
  %s6 = inlined_call_operand.<no memory space> [shape: f32[1,1], index: 6, kind: input, shape index: {}]
  %s7 = inlined_call_operand.hbm [shape: bf16[1,128], index: 7, kind: output, shape index: {}]
  %s8 = sld [smem:[#allocation0]]
  $region38: #{tpu_custom_call.1} parent=0
    _
  %s10 = ssub.s32 1, %s8
  %s11 = scalar_select 0, %s10, %s8
  %v12 = vstv %s6
  %13 = vst [vmem:[#allocation2] sm:$0x1] %v12
  $region1: #{tpu_custom_call.1} parent=0
    #allocation3 [shape = 'u8[512]{0}', space=vmem, size = 0x400, scoped, tag = 'output window, operand 0, single buffered']
    #allocation4 [shape = 's32[1]{0}', space=sflag, size = 0x4, scoped, tag = 'scoped memory for tpu_custom_call.1']
    %14 = vsyncpa [#allocation4], 0
    // Predicated region
    $region2: #{tpu_custom_call.1} parent=1 // pred_check
      _
    $region3: #{tpu_custom_call.1} parent=1 // pred_check_branch
      %16 = sbr.rel (0) target = $region5
    $region4: #{tpu_custom_call.1} parent=1 // pred_region
      _
    $region5: #{tpu_custom_call.1} parent=1 // pred_fallthru
      _
    // Predicated region
    $region6: #{tpu_custom_call.1} parent=1 // pred_check
      _
    $region7: #{tpu_custom_call.1} parent=1 // pred_check_branch
      %18 = sbr.rel (0) target = $region9
    $region8: #{tpu_custom_call.1} parent=1 // pred_region
      _
    $region9: #{tpu_custom_call.1} parent=1 // pred_fallthru
      _
    // Predicated region
    $region10: #{tpu_custom_call.1} parent=1 // pred_check
      _
    $region11: #{tpu_custom_call.1} parent=1 // pred_check_branch
      %20 = sbr.rel (0) target = $region13
    $region12: #{tpu_custom_call.1} parent=1 // pred_region
      _
    $region13: #{tpu_custom_call.1} parent=1 // pred_fallthru
      _
    // Predicated region
    $region14: #{tpu_custom_call.1} parent=1 // pred_check
      _
    $region15: #{tpu_custom_call.1} parent=1 // pred_check_branch
      %22 = sbr.rel (0) target = $region17
    $region16: #{tpu_custom_call.1} parent=1 // pred_region
      _
    $region17: #{tpu_custom_call.1} parent=1 // pred_fallthru
      _
    // Predicated region
    $region18: #{tpu_custom_call.1} parent=1 // pred_check
      _
    $region19: #{tpu_custom_call.1} parent=1 // pred_check_branch
      %24 = sbr.rel (0) target = $region21
    $region20: #{tpu_custom_call.1} parent=1 // pred_region
      _
    $region21: #{tpu_custom_call.1} parent=1 // pred_fallthru
      _
    // Predicated region
    $region22: #{tpu_custom_call.1} parent=1 // pred_check
      _
    $region23: #{tpu_custom_call.1} parent=1 // pred_check_branch
      %26 = sbr.rel (0) target = $region25
    $region24: #{tpu_custom_call.1} parent=1 // pred_region
      _
    $region25: #{tpu_custom_call.1} parent=1 // pred_fallthru
      _
    // Predicated region
    $region26: #{tpu_custom_call.1} parent=1 // pred_check
      _
    $region27: #{tpu_custom_call.1} parent=1 // pred_check_branch
      %28 = sbr.rel (0) target = $region29
    $region28: #{tpu_custom_call.1} parent=1 // pred_region
      _
    $region29: #{tpu_custom_call.1} parent=1 // pred_fallthru
      _
    %v29 = vld [vmem:[%s0] sm:$0x3]
    %v30 = vunpack.c.l.bf16 %v29
    %v31 = vld [vmem:[%s1] sm:$0xff]
    %v32 = vld [vmem:[%s1 + $0x8] sm:$0xff]
    %v33 = vld [vmem:[%s1 + $0x10] sm:$0xff]
    %v34 = vld [vmem:[%s1 + $0x18] sm:$0xff]
    %v35 = vld [vmem:[%s1 + $0x20] sm:$0xff]
    %v36 = vld [vmem:[%s1 + $0x28] sm:$0xff]
    %v37 = vld [vmem:[%s1 + $0x30] sm:$0xff]
    %v38 = vld [vmem:[%s1 + $0x38] sm:$0xff]
    %v39 = vld [vmem:[%s2] sm:$0xff]
    %v40 = vld [vmem:[%s2 + $0x8] sm:$0xff]
    %v41 = vld [vmem:[%s2 + $0x10] sm:$0xff]
    %v42 = vld [vmem:[%s2 + $0x18] sm:$0xff]
    %v43 = vld [vmem:[%s2 + $0x20] sm:$0xff]
    %v44 = vld [vmem:[%s2 + $0x28] sm:$0xff]
    %v45 = vld [vmem:[%s2 + $0x30] sm:$0xff]
    %v46 = vld [vmem:[%s2 + $0x38] sm:$0xff]
    %48 = vset.pattern.permute.xlu0 0
    %49 = vperm.xlu0 %48, %v39
    %v50 = vpop.permute.xlu0 %49
    %53 = vset.pattern.permute.xlu0 0
    %54 = vperm.xlu0 %53, %v40
    %v55 = vpop.permute.xlu0 %54
    %58 = vset.pattern.permute.xlu0 0
    %59 = vperm.xlu0 %58, %v41
    %v60 = vpop.permute.xlu0 %59
    %63 = vset.pattern.permute.xlu0 0
    %64 = vperm.xlu0 %63, %v42
    %v65 = vpop.permute.xlu0 %64
    %68 = vset.pattern.permute.xlu0 0
    %69 = vperm.xlu0 %68, %v43
    %v70 = vpop.permute.xlu0 %69
    %73 = vset.pattern.permute.xlu0 0
    %74 = vperm.xlu0 %73, %v44
    %v75 = vpop.permute.xlu0 %74
    %78 = vset.pattern.permute.xlu0 0
    %79 = vperm.xlu0 %78, %v45
    %v80 = vpop.permute.xlu0 %79
    %83 = vset.pattern.permute.xlu0 0
    %84 = vperm.xlu0 %83, %v46
    %v85 = vpop.permute.xlu0 %84
    %vm87 = vcmask 31744
    %v89 = vsel %vm87, %v31, 0
    %v92 = vsel %vm87, %v32, 0
    %v95 = vsel %vm87, %v33, 0
    %v98 = vsel %vm87, %v34, 0
    %v101 = vsel %vm87, %v35, 0
    %v104 = vsel %vm87, %v36, 0
    %v107 = vsel %vm87, %v37, 0
    %v110 = vsel %vm87, %v38, 0
    %vm112 = vcmask 1043456
    %v114 = vsel %vm112, %v30, 0
    %116 = vmatprep.subr.mxu0 0.0
    %117 = vmatpush1.msra.mxu0 %v114
    %118 = vmatprep.subr.mxu0 0.0
    %119 = vmatpush1.msra.mxu0 0.0
    %120 = vmatprep.subr.mxu0 0.0
    %121 = vmatpush1.msra.mxu0 0.0
    %122 = vmatprep.subr.mxu0 0.0
    %123 = vmatpush1.msra.mxu0 0.0
    %124 = vmatprep.subr.mxu0 0.0
    %125 = vmatpush1.msra.mxu0 0.0
    %126 = vmatprep.subr.mxu0 0.0
    %127 = vmatpush1.msra.mxu0 0.0
    %128 = vmatprep.subr.mxu0 0.0
    %129 = vmatpush1.msra.mxu0 0.0
    %130 = vmatprep.subr.mxu0 0.0
    %131 = vmatpush1.msra.mxu0 0.0
    %132 = vmatprep.subr.mxu0 0.0
    %133 = vmatpush1.msra.mxu0 0.0
    %134 = vmatprep.subr.mxu0 0.0
    %135 = vmatpush1.msra.mxu0 0.0
    %136 = vmatprep.subr.mxu0 0.0
    %137 = vmatpush1.msra.mxu0 0.0
    %138 = vmatprep.subr.mxu0 0.0
    %139 = vmatpush1.msra.mxu0 0.0
    %140 = vmatprep.subr.mxu0 0.0
    %141 = vmatpush1.msra.mxu0 0.0
    %142 = vmatprep.subr.mxu0 0.0
    %143 = vmatpush1.msra.mxu0 0.0
    %144 = vmatprep.subr.mxu0 0.0
    %145 = vmatpush1.msra.mxu0 0.0
    %146 = vmatprep.subr.mxu0 0.0
    %147 = vmatpush1.msra.mxu0 0.0
    %148 = vmatprep.subr.mxu0 0.0
    %149 = vmatpush1.msra.mxu0 0.0
    %150 = vmatprep.subr.mxu0 0.0
    %151 = vmatpush1.msra.mxu0 0.0
    %152 = vmatprep.subr.mxu0 0.0
    %153 = vmatpush1.msra.mxu0 0.0
    %154 = vmatprep.subr.mxu0 0.0
    %155 = vmatpush1.msra.mxu0 0.0
    %156 = vmatprep.subr.mxu0 0.0
    %157 = vmatpush1.msra.mxu0 0.0
    %158 = vmatprep.subr.mxu0 0.0
    %159 = vmatpush1.msra.mxu0 0.0
    %160 = vmatprep.subr.mxu0 0.0
    %161 = vmatpush1.msra.mxu0 0.0
    %162 = vmatprep.subr.mxu0 0.0
    %163 = vmatpush1.msra.mxu0 0.0
    %164 = vmatprep.subr.mxu0 0.0
    %165 = vmatpush1.msra.mxu0 0.0
    %166 = vmatprep.subr.mxu0 0.0
    %167 = vmatpush1.msra.mxu0 0.0
    %168 = vmatprep.subr.mxu0 0.0
    %169 = vmatpush1.msra.mxu0 0.0
    %170 = vmatprep.subr.mxu0 0.0
    %171 = vmatpush1.msra.mxu0 0.0
    %172 = vmatprep.subr.mxu0 0.0
    %173 = vmatpush1.msra.mxu0 0.0
    %174 = vmatprep.subr.mxu0 0.0
    %175 = vmatpush1.msra.mxu0 0.0
    %176 = vmatprep.subr.mxu0 0.0
    %177 = vmatpush1.msra.mxu0 0.0
    %178 = vmatprep.subr.mxu0 0.0
    %179 = vmatpush1.msra.mxu0 0.0
    %180 = vmatprep.mubr.f32.mxu0 0.0
    %181 = vmatmul.mubr.f32.gmra.mrb[0].mxu0 %v89
    %v182 = vpop.f32.mrb[0].mxu0
    %v183 = vadd.f32 %v50, %v182
    %v184 = vpop.f32.mrb[0].mxu0
    %185 = vmatprep.mubr.f32.mxu0 0.0
    %186 = vmatmul.mubr.f32.gmra.mrb[0].mxu0 %v92
    %v187 = vpop.f32.mrb[0].mxu0
    %v188 = vadd.f32 %v55, %v187
    %v189 = vpop.f32.mrb[0].mxu0
    %190 = vmatprep.mubr.f32.mxu0 0.0
    %191 = vmatmul.mubr.f32.gmra.mrb[0].mxu0 %v95
    %v192 = vpop.f32.mrb[0].mxu0
    %v193 = vadd.f32 %v60, %v192
    %v194 = vpop.f32.mrb[0].mxu0
    %195 = vmatprep.mubr.f32.mxu0 0.0
    %196 = vmatmul.mubr.f32.gmra.mrb[0].mxu0 %v98
    %v197 = vpop.f32.mrb[0].mxu0
    %v198 = vadd.f32 %v65, %v197
    %v199 = vpop.f32.mrb[0].mxu0
    %200 = vmatprep.mubr.f32.mxu0 0.0
    %201 = vmatmul.mubr.f32.gmra.mrb[0].mxu0 %v101
    %v202 = vpop.f32.mrb[0].mxu0
    %v203 = vadd.f32 %v70, %v202
    %v204 = vpop.f32.mrb[0].mxu0
    %205 = vmatprep.mubr.f32.mxu0 0.0
    %206 = vmatmul.mubr.f32.gmra.mrb[0].mxu0 %v104
    %v207 = vpop.f32.mrb[0].mxu0
    %v208 = vadd.f32 %v75, %v207
    %v209 = vpop.f32.mrb[0].mxu0
    %210 = vmatprep.mubr.f32.mxu0 0.0
    %211 = vmatmul.mubr.f32.gmra.mrb[0].mxu0 %v107
    %v212 = vpop.f32.mrb[0].mxu0
    %v213 = vadd.f32 %v80, %v212
    %v214 = vpop.f32.mrb[0].mxu0
    %215 = vmatprep.mubr.f32.mxu0 0.0
    %216 = vmatmul.mubr.f32.gmra.mrb[0].mxu0 %v110
    %v217 = vpop.f32.mrb[0].mxu0
    %v218 = vadd.f32 %v85, %v217
    %v219 = vpop.f32.mrb[0].mxu0
    %220 = vdwg.mxu0
    %v221 = vmax.f32 %v183, 0.0
    %v222 = vmax.f32 %v188, 0.0
    %v223 = vmax.f32 %v193, 0.0
    %v224 = vmax.f32 %v198, 0.0
    %v225 = vmax.f32 %v203, 0.0
    %v226 = vmax.f32 %v208, 0.0
    %v227 = vmax.f32 %v213, 0.0
    %v228 = vmax.f32 %v218, 0.0
    %v229 = vld [vmem:[%s3] sm:$0xff]
    %v230 = vld [vmem:[%s3 + $0x8] sm:$0xff]
    %v231 = vld [vmem:[%s3 + $0x10] sm:$0xff]
    %v232 = vld [vmem:[%s3 + $0x18] sm:$0xff]
    %v233 = vld [vmem:[%s4] sm:$0xff]
    %v234 = vld [vmem:[%s4 + $0x8] sm:$0xff]
    %v235 = vld [vmem:[%s4 + $0x10] sm:$0xff]
    %v236 = vld [vmem:[%s4 + $0x18] sm:$0xff]
    %238 = vset.pattern.permute.xlu0 0
    %239 = vperm.xlu0 %238, %v233
    %v240 = vpop.permute.xlu0 %239
    %243 = vset.pattern.permute.xlu0 0
    %244 = vperm.xlu0 %243, %v234
    %v245 = vpop.permute.xlu0 %244
    %248 = vset.pattern.permute.xlu0 0
    %249 = vperm.xlu0 %248, %v235
    %v250 = vpop.permute.xlu0 %249
    %253 = vset.pattern.permute.xlu0 0
    %254 = vperm.xlu0 %253, %v236
    %v255 = vpop.permute.xlu0 %254
    %vm257 = vcmask 523264
    %v259 = vsel %vm257, %v229, 0
    %v262 = vsel %vm257, %v230, 0
    %v265 = vsel %vm257, %v231, 0
    %v268 = vsel %vm257, %v232, 0
    %270 = vmatprep.subr.mxu0 0.0
    %271 = vmatpush1.msra.mxu0 %v221
    %272 = vmatprep.subr.mxu0 0.0
    %273 = vmatpush1.msra.mxu0 %v222
    %274 = vmatprep.subr.mxu0 0.0
    %275 = vmatpush1.msra.mxu0 %v223
    %276 = vmatprep.subr.mxu0 0.0
    %277 = vmatpush1.msra.mxu0 %v224
    %278 = vmatprep.subr.mxu0 0.0
    %279 = vmatpush1.msra.mxu0 %v225
    %280 = vmatprep.subr.mxu0 0.0
    %281 = vmatpush1.msra.mxu0 %v226
    %282 = vmatprep.subr.mxu0 0.0
    %283 = vmatpush1.msra.mxu0 %v227
    %284 = vmatprep.subr.mxu0 0.0
    %285 = vmatpush1.msra.mxu0 %v228
    %286 = vmatprep.subr.mxu0 0.0
    %287 = vmatpush1.msra.mxu0 0.0
    %288 = vmatprep.subr.mxu0 0.0
    %289 = vmatpush1.msra.mxu0 0.0
    %290 = vmatprep.subr.mxu0 0.0
    %291 = vmatpush1.msra.mxu0 0.0
    %292 = vmatprep.subr.mxu0 0.0
    %293 = vmatpush1.msra.mxu0 0.0
    %294 = vmatprep.subr.mxu0 0.0
    %295 = vmatpush1.msra.mxu0 0.0
    %296 = vmatprep.subr.mxu0 0.0
    %297 = vmatpush1.msra.mxu0 0.0
    %298 = vmatprep.subr.mxu0 0.0
    %299 = vmatpush1.msra.mxu0 0.0
    %300 = vmatprep.subr.mxu0 0.0
    %301 = vmatpush1.msra.mxu0 0.0
    %302 = vmatprep.subr.mxu0 0.0
    %303 = vmatpush1.msra.mxu0 0.0
    %304 = vmatprep.subr.mxu0 0.0
    %305 = vmatpush1.msra.mxu0 0.0
    %306 = vmatprep.subr.mxu0 0.0
    %307 = vmatpush1.msra.mxu0 0.0
    %308 = vmatprep.subr.mxu0 0.0
    %309 = vmatpush1.msra.mxu0 0.0
    %310 = vmatprep.subr.mxu0 0.0
    %311 = vmatpush1.msra.mxu0 0.0
    %312 = vmatprep.subr.mxu0 0.0
    %313 = vmatpush1.msra.mxu0 0.0
    %314 = vmatprep.subr.mxu0 0.0
    %315 = vmatpush1.msra.mxu0 0.0
    %316 = vmatprep.subr.mxu0 0.0
    %317 = vmatpush1.msra.mxu0 0.0
    %318 = vmatprep.subr.mxu0 0.0
    %319 = vmatpush1.msra.mxu0 0.0
    %320 = vmatprep.subr.mxu0 0.0
    %321 = vmatpush1.msra.mxu0 0.0
    %322 = vmatprep.subr.mxu0 0.0
    %323 = vmatpush1.msra.mxu0 0.0
    %324 = vmatprep.subr.mxu0 0.0
    %325 = vmatpush1.msra.mxu0 0.0
    %326 = vmatprep.subr.mxu0 0.0
    %327 = vmatpush1.msra.mxu0 0.0
    %328 = vmatprep.subr.mxu0 0.0
    %329 = vmatpush1.msra.mxu0 0.0
    %330 = vmatprep.subr.mxu0 0.0
    %331 = vmatpush1.msra.mxu0 0.0
    %332 = vmatprep.subr.mxu0 0.0
    %333 = vmatpush1.msra.mxu0 0.0
    %334 = vmatprep.mubr.f32.mxu0 0.0
    %335 = vmatmul.mubr.f32.gmra.mrb[0].mxu0 %v259
    %v336 = vpop.f32.mrb[0].mxu0
    %v337 = vadd.f32 %v240, %v336
    %v338 = vpop.f32.mrb[0].mxu0
    %339 = vmatprep.mubr.f32.mxu0 0.0
    %340 = vmatmul.mubr.f32.gmra.mrb[0].mxu0 %v262
    %v341 = vpop.f32.mrb[0].mxu0
    %v342 = vadd.f32 %v245, %v341
    %v343 = vpop.f32.mrb[0].mxu0
    %344 = vmatprep.mubr.f32.mxu0 0.0
    %345 = vmatmul.mubr.f32.gmra.mrb[0].mxu0 %v265
    %v346 = vpop.f32.mrb[0].mxu0
    %v347 = vadd.f32 %v250, %v346
    %v348 = vpop.f32.mrb[0].mxu0
    %349 = vmatprep.mubr.f32.mxu0 0.0
    %350 = vmatmul.mubr.f32.gmra.mrb[0].mxu0 %v268
    %v351 = vpop.f32.mrb[0].mxu0
    %v352 = vadd.f32 %v255, %v351
    %v353 = vpop.f32.mrb[0].mxu0
    %354 = vdwg.mxu0
    %v355 = vmax.f32 %v337, 0.0
    %v356 = vmax.f32 %v342, 0.0
    %v357 = vmax.f32 %v347, 0.0
    %v358 = vmax.f32 %v352, 0.0
    %v359 = vld [vmem:[%s5] sm:$0xff]
    %v360 = vld [vmem:[%s5 + $0x8] sm:$0xff]
    %v361 = vld [vmem:[%s5 + $0x10] sm:$0xff]
    %v362 = vld [vmem:[%s5 + $0x18] sm:$0xff]
    %364 = vset.pattern.permute.xlu0 0
    %365 = vperm.xlu0 %364, %v359
    %v366 = vpop.permute.xlu0 %365
    %369 = vset.pattern.permute.xlu0 0
    %370 = vperm.xlu0 %369, %v360
    %v371 = vpop.permute.xlu0 %370
    %374 = vset.pattern.permute.xlu0 0
    %375 = vperm.xlu0 %374, %v361
    %v376 = vpop.permute.xlu0 %375
    %379 = vset.pattern.permute.xlu0 0
    %380 = vperm.xlu0 %379, %v362
    %v381 = vpop.permute.xlu0 %380
    %v383 = vmul.f32 %v366, %v355
    %v384 = vmul.f32 %v371, %v356
    %v385 = vmul.f32 %v376, %v357
    %v386 = vmul.f32 %v381, %v358
    %v387 = vadd.f32 %v383, %v384
    %v388 = vadd.f32 %v387, %v385
    %v389 = vadd.f32 %v388, %v386
    %v390 = vrot.slane %v389, 4
    %v391 = vadd.f32 %v389, %v390
    %v392 = vrot.slane %v391, 2
    %v393 = vadd.f32 %v391, %v392
    %v394 = vrot.slane %v393, 1
    %v395 = vadd.f32 %v393, %v394
    %v396 = vld [vmem:[#allocation2] sm:$0x1]
    %398 = vset.pattern.permute.xlu0 0
    %399 = vperm.xlu0 %398, %v396
    %v400 = vpop.permute.xlu0 %399
    %v402 = vlaneseq
    %v403 = vshrl.u32 %v402, 7
    %v404 = vsub.s32 0, %v403
    %v405 = vrot.slane %v400, %v404
    %v406 = vadd.f32 %v395, %v405
    %v407 = vpack.c.bf16 %v406, %v406
    %vm408 = vcmask 1040384
    %vm409 = vsmask.f32 256
    %vm410 = vmand %vm408, %vm409
    %v411 = vld [vmem:[#allocation3] sm:$0x1]
    %v412 = vsel %vm410, %v407, %v411
    %413 = vst [vmem:[#allocation3] sm:$0x1] %v412
    // Predicated region
    $region30: #{tpu_custom_call.1} parent=1 // pred_check
      _
    $region31: #{tpu_custom_call.1} parent=1 // pred_check_branch
      %415 = sbr.rel (0) target = $region33
    $region32: #{tpu_custom_call.1} parent=1 // pred_region
      %s417 = ssub.s32 16, 16
      %418 = vsyncadd [#allocation4], %s417
      %s420 = sshll.u32 [#allocation3], 4
      %s421 = int_to_ptr.vmem [resolvable:$true] %s420
      %423 = dma.vmem_to_hbm [thread:$0]  %s421, 16, %s7, [#allocation4]
    $region33: #{tpu_custom_call.1} parent=1 // pred_fallthru
      _
    // Predicated region
    $region34: #{tpu_custom_call.1} parent=1 // pred_check
      _
    $region35: #{tpu_custom_call.1} parent=1 // pred_check_branch
      %425 = sbr.rel (0) target = $region37
    $region36: #{tpu_custom_call.1} parent=1 // pred_region
      %426 = dma.done [#allocation4], 16
    $region37: #{tpu_custom_call.1} parent=1 // pred_fallthru
      _
    %427 = vsyncpa [#allocation4], 1

</llo_original>
